<compile_context>
chip_gen: v7x
topology: tpu7x:2x2x1
jax: 0.10.0
libtpu: 0.0.40
codegen_flags: <defaults>
</compile_context>

<pallas_src>
import functools

import jax
import jax.numpy as jnp
from jax.experimental import pallas as pl
from jax.experimental.pallas import tpu as pltpu


def _prompt_end_shared_kernel(ctx_ref, prefix_hbm, suffix_hbm, out_hbm,
                              ctx_bcast, sem, *, block_b, n_ctx, s_suf, n_cls):
    """Shared (generic) context: ctx_ref is a VMEM-resident (n_ctx, D) block."""
    i = pl.program_id(0)
    # Clamp so the ragged last block overlaps the previous one (identical data rewrite).
    start = jnp.minimum(i * block_b, n_cls - block_b)

    # 1) Kick off the big pure-copy HBM->HBM DMAs first (bulk of the bytes).
    pre_cp = pltpu.make_async_copy(
        prefix_hbm.at[pl.ds(start, block_b)],
        out_hbm.at[pl.ds(start, block_b), pl.ds(0, 1), :],
        sem.at[0])
    suf_cp = pltpu.make_async_copy(
        suffix_hbm.at[pl.ds(start, block_b)],
        out_hbm.at[pl.ds(start, block_b), pl.ds(1 + n_ctx, s_suf), :],
        sem.at[1])
    pre_cp.start()
    suf_cp.start()

    # 2) Broadcast the shared ctx across the B classes of this block (TensorCore work,
    #    hidden under the in-flight prefix/suffix DMAs), then one strided DMA to the output.
    ctx_bcast[...] = jnp.broadcast_to(ctx_ref[...], ctx_bcast.shape)
    ctx_cp = pltpu.make_async_copy(
        ctx_bcast,
        out_hbm.at[pl.ds(start, block_b), pl.ds(1, n_ctx), :],
        sem.at[2])
    ctx_cp.start()

    pre_cp.wait()
    suf_cp.wait()
    ctx_cp.wait()


def _prompt_end_csc_kernel(prefix_hbm, ctx_hbm, suffix_hbm, out_hbm, sem,
                           *, block_b, n_ctx, s_suf, n_cls):
    """Class-specific contexts: everything is a straight HBM->HBM strided copy."""
    i = pl.program_id(0)
    start = jnp.minimum(i * block_b, n_cls - block_b)
    copies = (
        pltpu.make_async_copy(
            prefix_hbm.at[pl.ds(start, block_b)],
            out_hbm.at[pl.ds(start, block_b), pl.ds(0, 1), :],
            sem.at[0]),
        pltpu.make_async_copy(
            ctx_hbm.at[pl.ds(start, block_b)],
            out_hbm.at[pl.ds(start, block_b), pl.ds(1, n_ctx), :],
            sem.at[1]),
        pltpu.make_async_copy(
            suffix_hbm.at[pl.ds(start, block_b)],
            out_hbm.at[pl.ds(start, block_b), pl.ds(1 + n_ctx, s_suf), :],
            sem.at[2]),
    )
    for cp in copies:
        cp.start()
    for cp in copies:
        cp.wait()


def prompt_learner_forward(ctx, token_prefix, token_suffix,
                           class_token_position="end",
                           class_batch=None,
                           ctx_scratch_budget_bytes=8 * 1024 * 1024):
    """JAX/Pallas equivalent of PromptLearner.forward().

    ctx          : (n_ctx, D) generic context, or (n_cls, n_ctx, D) class-specific (CSC)
    token_prefix : (n_cls, 1, D)      -- SOS token embedding per class
    token_suffix : (n_cls, S_suf, D)  -- class name + EOS + padding embeddings
    returns      : (n_cls, 1 + n_ctx + S_suf, D)
    """
    if class_token_position != "end":
        # TODO(synk): 'middle'/'front' positions need per-class ragged slicing by
        # name_lens; not expressible as static-size DMAs in this kernel.
        raise NotImplementedError("only class_token_position='end' implemented")

    n_cls, one, D = token_prefix.shape
    assert one == 1, token_prefix.shape
    s_suf = token_suffix.shape[1]
    assert token_suffix.shape == (n_cls, s_suf, D), token_suffix.shape
    dtype = token_prefix.dtype
    assert token_suffix.dtype == dtype
    itemsize = jnp.dtype(dtype).itemsize

    csc = ctx.ndim == 3
    if csc:
        assert ctx.shape[0] == n_cls and ctx.shape[2] == D, ctx.shape
        n_ctx = ctx.shape[1]
    else:
        assert ctx.ndim == 2 and ctx.shape[1] == D, ctx.shape
        n_ctx = ctx.shape[0]
    seq_len = 1 + n_ctx + s_suf

    # Match the prompt dtype up front (no-op in the usual case where ctx already has
    # clip_model.dtype).  Keeps the kernel pure data movement so CSC ctx can go
    # HBM->HBM without staging.
    ctx = ctx.astype(dtype)

    # ---- classes per grid step ----------------------------------------------------
    if csc:
        b_budget = n_cls                      # no VMEM scratch needed in CSC mode
    else:
        b_budget = max(1, ctx_scratch_budget_bytes // (n_ctx * D * itemsize))
    min_steps = 2 if n_cls >= 2 else 1        # keep both v7x TensorCores busy
    B = int(max(1, min(n_cls, b_budget, pl.cdiv(n_cls, min_steps))))
    if class_batch is not None:
        B = int(max(1, min(n_cls, class_batch)))
    grid = (pl.cdiv(n_cls, B),)

    # VMEM actually used: broadcast scratch + tiny resident ctx block (conservatively
    # double-buffered).  Derived from the FINAL B, so an explicit class_batch can never
    # exceed the declared limit.  Stays far below v7x's 64 MiB per-TC VMEM.
    vmem_needed = 0 if csc else (B + 2) * n_ctx * D * itemsize
    vmem_limit = int(min(vmem_needed + (4 << 20), 100 * 1024 * 1024))

    out_shape = jax.ShapeDtypeStruct((n_cls, seq_len, D), dtype)
    any_spec = pl.BlockSpec(memory_space=pl.ANY)

    if csc:
        kernel = functools.partial(_prompt_end_csc_kernel,
                                   block_b=B, n_ctx=n_ctx, s_suf=s_suf, n_cls=n_cls)
        in_specs = [any_spec, any_spec, any_spec]
        operands = (token_prefix, ctx, token_suffix)
        scratch_shapes = [pltpu.SemaphoreType.DMA((3,))]
    else:
        kernel = functools.partial(_prompt_end_shared_kernel,
                                   block_b=B, n_ctx=n_ctx, s_suf=s_suf, n_cls=n_cls)
        in_specs = [
            pl.BlockSpec((n_ctx, D), lambda i: (0, 0)),  # resident shared ctx, no re-DMA
            any_spec,                                    # prefix stays in HBM
            any_spec,                                    # suffix stays in HBM
        ]
        operands = (ctx, token_prefix, token_suffix)
        scratch_shapes = [pltpu.VMEM((B, n_ctx, D), dtype),
                          pltpu.SemaphoreType.DMA((3,))]

    return pl.pallas_call(
        kernel,
        out_shape=out_shape,
        grid=grid,
        in_specs=in_specs,
        out_specs=any_spec,                              # output written via manual DMA
        scratch_shapes=scratch_shapes,
        compiler_params=pltpu.CompilerParams(
            dimension_semantics=("parallel",),
            vmem_limit_bytes=vmem_limit),
    )(*operands)


def _reference_forward(ctx, token_prefix, token_suffix):
    n_cls = token_prefix.shape[0]
    if ctx.ndim == 2:
        ctx = jnp.broadcast_to(ctx[None], (n_cls,) + ctx.shape)
    return jnp.concatenate(
        [token_prefix, ctx.astype(token_prefix.dtype), token_suffix], axis=1)


if __name__ == "__main__":
    # Small, module-consistent shapes:
    #   n_cls classes, n_ctx learnable context tokens, ctx_dim embedding width,
    #   CLIP-style total prompt length seq_len (here 16 instead of 77).
    n_cls, n_ctx, ctx_dim, seq_len = 4, 4, 128, 16
    s_suf = seq_len - 1 - n_ctx
    dtype = jnp.float32

    key = jax.random.PRNGKey(0)
    k_ctx, k_csc, k_pre, k_suf = jax.random.split(key, 4)

    # ctx ~ N(0, 0.02) as in nn.init.normal_(ctx_vectors, std=0.02)   (generic context)
    ctx = (0.02 * jax.random.normal(k_ctx, (n_ctx, ctx_dim))).astype(dtype)
    # Class-specific contexts (cfg.CSC == True path)
    ctx_csc = (0.02 * jax.random.normal(k_csc, (n_cls, n_ctx, ctx_dim))).astype(dtype)
    # Deterministic stand-ins for clip_model.token_embedding(tokenized_prompts)
    token_prefix = jax.random.normal(k_pre, (n_cls, 1, ctx_dim)).astype(dtype)
    token_suffix = jax.random.normal(k_suf, (n_cls, s_suf, ctx_dim)).astype(dtype)

    ref = _reference_forward(ctx, token_prefix, token_suffix)
    ref_csc = _reference_forward(ctx_csc, token_prefix, token_suffix)

    # 1) Generic (shared) context, auto class-batch (>= 2 grid steps).
    prompts = jax.block_until_ready(
        prompt_learner_forward(ctx, token_prefix, token_suffix))
    assert prompts.shape == (n_cls, seq_len, ctx_dim), prompts.shape
    assert prompts.dtype == dtype
    assert jnp.array_equal(prompts, ref), "generic-ctx Pallas output mismatch"

    # 2) Generic context with a class batch that does NOT divide n_cls
    #    (exercises the clamped, overlapping last block).
    prompts_b = jax.block_until_ready(
        prompt_learner_forward(ctx, token_prefix, token_suffix, class_batch=3))
    assert jnp.array_equal(prompts_b, ref), "ragged-block output mismatch"

    # 3) Class-specific contexts (CSC): pure HBM->HBM DMA path.
    prompts_csc = jax.block_until_ready(
        prompt_learner_forward(ctx_csc, token_prefix, token_suffix))
    assert jnp.array_equal(prompts_csc, ref_csc), "CSC Pallas output mismatch"

    print("KERNEL_OK")
</pallas_src>

<mosaic_0001>
module attributes {stable_mosaic.version = 11 : i64} {
  func.func @_prompt_end_shared_kernel(%arg0: i32, %arg1: memref<4x128xf32, #tpu.memory_space<vmem>>, %arg2: memref<4x1x128xf32, #tpu.memory_space<any>>, %arg3: memref<4x11x128xf32, #tpu.memory_space<any>>, %arg4: memref<4x16x128xf32, #tpu.memory_space<any>>, %arg5: memref<2x4x128xf32, #tpu.memory_space<vmem>>, %arg6: memref<3x!tpu.dma_semaphore, #tpu.memory_space<semaphore_mem>>) attributes {dimension_semantics = [#tpu.dimension_semantics<parallel>], iteration_bounds = array<i64: 2>, scalar_prefetch = 0 : i64, scratch_operands = 2 : i64, tpu.core_type = #tpu.core_type<tc>, window_params = [{pipeline_mode = #tpu.pipeline_mode<synchronous>, transform_indices = @transform_0, window_bounds = array<i64: 4, 128>}, {}, {}, {}]} {
    %c2_i32 = arith.constant 2 : i32
    %0 = arith.muli %arg0, %c2_i32 : i32
    %c2_i32_0 = arith.constant 2 : i32
    %1 = arith.minsi %0, %c2_i32_0 : i32
    %c0_i32 = arith.constant 0 : i32
    %c0_i32_1 = arith.constant 0 : i32
    %c0_i32_2 = arith.constant 0 : i32
    %2 = tpu.memref_slice %arg2[%1, %c0_i32_1, %c0_i32_2] : memref<4x1x128xf32, #tpu.memory_space<any>> -> memref<2x1x128xf32, #tpu.memory_space<any>>
    %c0_i32_3 = arith.constant 0 : i32
    %c0_i32_4 = arith.constant 0 : i32
    %3 = tpu.memref_slice %arg4[%1, %c0_i32_3, %c0_i32_4] : memref<4x16x128xf32, #tpu.memory_space<any>> -> memref<2x1x128xf32, #tpu.memory_space<any>>
    %4 = tpu.memref_slice %arg6[%c0_i32] : memref<3x!tpu.dma_semaphore, #tpu.memory_space<semaphore_mem>> -> memref<1x!tpu.dma_semaphore, #tpu.memory_space<semaphore_mem>>
    %5 = tpu.memref_squeeze %4 : memref<1x!tpu.dma_semaphore, #tpu.memory_space<semaphore_mem>> -> memref<!tpu.dma_semaphore, #tpu.memory_space<semaphore_mem>>
    tpu.enqueue_dma source(%2 : memref<2x1x128xf32, #tpu.memory_space<any>>) target(%3 : memref<2x1x128xf32, #tpu.memory_space<any>>) target_semaphore(%5 : memref<!tpu.dma_semaphore, #tpu.memory_space<semaphore_mem>>)
    %c1_i32 = arith.constant 1 : i32
    %c0_i32_5 = arith.constant 0 : i32
    %c0_i32_6 = arith.constant 0 : i32
    %6 = tpu.memref_slice %arg3[%1, %c0_i32_5, %c0_i32_6] : memref<4x11x128xf32, #tpu.memory_space<any>> -> memref<2x11x128xf32, #tpu.memory_space<any>>
    %c5_i32 = arith.constant 5 : i32
    %c0_i32_7 = arith.constant 0 : i32
    %7 = tpu.memref_slice %arg4[%1, %c5_i32, %c0_i32_7] : memref<4x16x128xf32, #tpu.memory_space<any>> -> memref<2x11x128xf32, #tpu.memory_space<any>>
    %8 = tpu.memref_slice %arg6[%c1_i32] : memref<3x!tpu.dma_semaphore, #tpu.memory_space<semaphore_mem>> -> memref<1x!tpu.dma_semaphore, #tpu.memory_space<semaphore_mem>>
    %9 = tpu.memref_squeeze %8 : memref<1x!tpu.dma_semaphore, #tpu.memory_space<semaphore_mem>> -> memref<!tpu.dma_semaphore, #tpu.memory_space<semaphore_mem>>
    tpu.enqueue_dma source(%6 : memref<2x11x128xf32, #tpu.memory_space<any>>) target(%7 : memref<2x11x128xf32, #tpu.memory_space<any>>) target_semaphore(%9 : memref<!tpu.dma_semaphore, #tpu.memory_space<semaphore_mem>>)
    %c0 = arith.constant 0 : index
    %c0_8 = arith.constant 0 : index
    %10 = vector.load %arg1[%c0, %c0_8] : memref<4x128xf32, #tpu.memory_space<vmem>>, vector<4x128xf32>
    %11 = vector.shape_cast %10 : vector<4x128xf32> to vector<1x4x128xf32>
    %12 = vector.broadcast %11 : vector<1x4x128xf32> to vector<2x4x128xf32>
    %c0_9 = arith.constant 0 : index
    %c0_10 = arith.constant 0 : index
    %c0_11 = arith.constant 0 : index
    %13 = vector.load %arg5[%c0_9, %c0_10, %c0_11] : memref<2x4x128xf32, #tpu.memory_space<vmem>>, vector<2x4x128xf32>
    tpu.vector_store %arg5[%c0_9, %c0_10, %c0_11], %12 {strides = array<i32>} : memref<2x4x128xf32, #tpu.memory_space<vmem>>, vector<2x4x128xf32>,
    %c2_i32_12 = arith.constant 2 : i32
    %c1_i32_13 = arith.constant 1 : i32
    %c0_i32_14 = arith.constant 0 : i32
    %14 = tpu.memref_slice %arg4[%1, %c1_i32_13, %c0_i32_14] : memref<4x16x128xf32, #tpu.memory_space<any>> -> memref<2x4x128xf32, #tpu.memory_space<any>>
    %15 = tpu.memref_slice %arg6[%c2_i32_12] : memref<3x!tpu.dma_semaphore, #tpu.memory_space<semaphore_mem>> -> memref<1x!tpu.dma_semaphore, #tpu.memory_space<semaphore_mem>>
    %16 = tpu.memref_squeeze %15 : memref<1x!tpu.dma_semaphore, #tpu.memory_space<semaphore_mem>> -> memref<!tpu.dma_semaphore, #tpu.memory_space<semaphore_mem>>
    tpu.enqueue_dma source(%arg5 : memref<2x4x128xf32, #tpu.memory_space<vmem>>) target(%14 : memref<2x4x128xf32, #tpu.memory_space<any>>) target_semaphore(%16 : memref<!tpu.dma_semaphore, #tpu.memory_space<semaphore_mem>>)
    %c0_i32_15 = arith.constant 0 : i32
    %c0_i32_16 = arith.constant 0 : i32
    %c0_i32_17 = arith.constant 0 : i32
    %17 = tpu.memref_slice %arg2[%1, %c0_i32_16, %c0_i32_17] : memref<4x1x128xf32, #tpu.memory_space<any>> -> memref<2x1x128xf32, #tpu.memory_space<any>>
    %c0_i32_18 = arith.constant 0 : i32
    %c0_i32_19 = arith.constant 0 : i32
    %18 = tpu.memref_slice %arg4[%1, %c0_i32_18, %c0_i32_19] : memref<4x16x128xf32, #tpu.memory_space<any>> -> memref<2x1x128xf32, #tpu.memory_space<any>>
    %19 = tpu.memref_slice %arg6[%c0_i32_15] : memref<3x!tpu.dma_semaphore, #tpu.memory_space<semaphore_mem>> -> memref<1x!tpu.dma_semaphore, #tpu.memory_space<semaphore_mem>>
    %20 = tpu.memref_squeeze %19 : memref<1x!tpu.dma_semaphore, #tpu.memory_space<semaphore_mem>> -> memref<!tpu.dma_semaphore, #tpu.memory_space<semaphore_mem>>
    tpu.wait_dma2 semaphore(%20 : memref<!tpu.dma_semaphore, #tpu.memory_space<semaphore_mem>>) src(%17 : memref<2x1x128xf32, #tpu.memory_space<any>>) dst(%18 : memref<2x1x128xf32, #tpu.memory_space<any>>)
    %c1_i32_20 = arith.constant 1 : i32
    %c0_i32_21 = arith.constant 0 : i32
    %c0_i32_22 = arith.constant 0 : i32
    %21 = tpu.memref_slice %arg3[%1, %c0_i32_21, %c0_i32_22] : memref<4x11x128xf32, #tpu.memory_space<any>> -> memref<2x11x128xf32, #tpu.memory_space<any>>
    %c5_i32_23 = arith.constant 5 : i32
    %c0_i32_24 = arith.constant 0 : i32
    %22 = tpu.memref_slice %arg4[%1, %c5_i32_23, %c0_i32_24] : memref<4x16x128xf32, #tpu.memory_space<any>> -> memref<2x11x128xf32, #tpu.memory_space<any>>
    %23 = tpu.memref_slice %arg6[%c1_i32_20] : memref<3x!tpu.dma_semaphore, #tpu.memory_space<semaphore_mem>> -> memref<1x!tpu.dma_semaphore, #tpu.memory_space<semaphore_mem>>
    %24 = tpu.memref_squeeze %23 : memref<1x!tpu.dma_semaphore, #tpu.memory_space<semaphore_mem>> -> memref<!tpu.dma_semaphore, #tpu.memory_space<semaphore_mem>>
    tpu.wait_dma2 semaphore(%24 : memref<!tpu.dma_semaphore, #tpu.memory_space<semaphore_mem>>) src(%21 : memref<2x11x128xf32, #tpu.memory_space<any>>) dst(%22 : memref<2x11x128xf32, #tpu.memory_space<any>>)
    %c2_i32_25 = arith.constant 2 : i32
    %c1_i32_26 = arith.constant 1 : i32
    %c0_i32_27 = arith.constant 0 : i32
    %25 = tpu.memref_slice %arg4[%1, %c1_i32_26, %c0_i32_27] : memref<4x16x128xf32, #tpu.memory_space<any>> -> memref<2x4x128xf32, #tpu.memory_space<any>>
    %26 = tpu.memref_slice %arg6[%c2_i32_25] : memref<3x!tpu.dma_semaphore, #tpu.memory_space<semaphore_mem>> -> memref<1x!tpu.dma_semaphore, #tpu.memory_space<semaphore_mem>>
    %27 = tpu.memref_squeeze %26 : memref<1x!tpu.dma_semaphore, #tpu.memory_space<semaphore_mem>> -> memref<!tpu.dma_semaphore, #tpu.memory_space<semaphore_mem>>
    tpu.wait_dma2 semaphore(%27 : memref<!tpu.dma_semaphore, #tpu.memory_space<semaphore_mem>>) src(%arg5 : memref<2x4x128xf32, #tpu.memory_space<vmem>>) dst(%25 : memref<2x4x128xf32, #tpu.memory_space<any>>)
    return
  }
  func.func @transform_0(%arg0: i32) -> (i32, i32) {
    %c0_i32 = arith.constant 0 : i32
    %c0_i32_0 = arith.constant 0 : i32
    %c0_i32_1 = arith.constant 0 : i32
    return %c0_i32, %c0_i32_0 : i32, i32
  }
}

</mosaic_0001>

<llo_original>
// kernel: tpu_custom_call.1
$region0: #{tpu_custom_call.1}
  #allocation0 [shape = 'u32[]', space=smem, size = 0x4, offset = 0x4, fixed_abs, tag = 'smem constant byte address 0x4 - core index']
  #allocation1 [shape = 'u32[144,128]{1,0:T(1,128)}', space=vmem, size = 0x12000, scoped, tag = 'internal scratch']
  #allocation2 [shape = 'f32[2,4,128]{2,1,0:T(4,128)}', space=vmem, size = 0x1000, scoped, tag = 'scratch operand']
  #allocation3 [shape = 's32[3]{0}', space=sflag, size = 0xc, scoped, tag = 'scratch operand']
  #allocation4 [shape = 's32[]', space=sflag, size = 0x4, offset = 0, fixed_abs, tag = 'sflag constant byte address 0x0 - dummy sync flag']
  #allocation5 [shape = 's32[]', space=sflag, size = 0x4, offset = 0, fixed_abs, tag = 'sflag constant byte address 0x0 - dummy sync flag']
  #allocation6 [shape = 's32[]', space=sflag, size = 0x4, offset = 0, fixed_abs, tag = 'sflag constant byte address 0x0 - dummy sync flag']
  %s0 = inlined_call_operand.vmem [shape: f32[4,128], index: 0, kind: input, shape index: {}]
  %s1 = inlined_call_operand.vmem [shape: f32[4,1,128], index: 1, kind: input, shape index: {}]
  %s2 = inlined_call_operand.vmem [shape: f32[4,11,128], index: 2, kind: input, shape index: {}]
  %s3 = inlined_call_operand.hbm [shape: f32[4,16,128], index: 3, kind: output, shape index: {}]
  %s4 = sld [smem:[#allocation0]]
  $region25: #{tpu_custom_call.1} parent=0
    _
  %s6 = ssub.s32 1, %s4
  %s7 = scalar_select 0, %s6, %s4
  loop: start=0, step=1, limit=3
  $region2: #{tpu_custom_call.1} parent=0 // loop_pre_header
    _
  $region3: #{tpu_custom_call.1} parent=0 // loop_header
    %s9 = sphi 0, %s13
    %p10 = scmp.ge.s32.totalorder %s9, 3
    %s16 = sphi 0, %s16
    %s18 = sphi 0, %s16
    %s26 = sphi 0, %s18
  $region4: #{tpu_custom_call.1} parent=0 // loop_header_branch
    %12 = sbr.rel (%p10) target = $region8
  $region5: #{tpu_custom_call.1} parent=0 // loop_body
    %s14 = ssub.s32 %s9, 1
    %s15 = sadd.s32 %s9, 1
    %s17 = sadd.s32 %s16, 1
    %p19 = scmp.eq.s32.totalorder %s9, 1
    %p20 = scmp.ne.s32.totalorder %s16, %s18
    %p21 = scmp.eq.s32.totalorder %s9, 0
    %p22 = por %p20, %p21
    %p23 = scmp.ne.s32.totalorder %s16, %s18
    %p24 = scmp.eq.s32.totalorder %s14, 1
    %p25 = por %p23, %p24
    %p27 = scmp.ne.s32.totalorder %s18, %s26
    %p28 = scmp.eq.s32.totalorder %s14, 0
    %p29 = por %p27, %p28
    %p30 = scmp.le.s32.totalorder 1, %s9
    // Predicated region
    $region9: #{tpu_custom_call.1} parent=5 // pred_check
      %p31 = pneg %p30
    $region10: #{tpu_custom_call.1} parent=5 // pred_check_branch
      %33 = sbr.rel (%p31) target = $region12
    $region11: #{tpu_custom_call.1} parent=5 // pred_region
      %s34 = ssub.s32 %s9, 1
      // Predicated region
      $region13: #{tpu_custom_call.1} parent=11 // pred_check
        %p35 = pneg %p29
      $region14: #{tpu_custom_call.1} parent=11 // pred_check_branch
        %37 = sbr.rel (%p35) target = $region16
      $region15: #{tpu_custom_call.1} parent=11 // pred_region
        _
      $region16: #{tpu_custom_call.1} parent=11 // pred_fallthru
        _
    $region12: #{tpu_custom_call.1} parent=5 // pred_fallthru
      _
    %p38 = scmp.lt.s32.totalorder %s9, 2
    // Predicated region
    $region17: #{tpu_custom_call.1} parent=5 // pred_check
      %p39 = pneg %p38
    $region18: #{tpu_custom_call.1} parent=5 // pred_check_branch
      %41 = sbr.rel (%p39) target = $region20
    $region19: #{tpu_custom_call.1} parent=5 // pred_region
      _
    $region20: #{tpu_custom_call.1} parent=5 // pred_fallthru
      _
    %p42 = scmp.le.s32.totalorder 1, %s9
    // Predicated region
    $region21: #{tpu_custom_call.1} parent=5 // pred_check
      %p43 = pneg %p42
    $region22: #{tpu_custom_call.1} parent=5 // pred_check_branch
      %45 = sbr.rel (%p43) target = $region24
    $region23: #{tpu_custom_call.1} parent=5 // pred_region
      %s46 = ssub.s32 %s9, 1
      %p47 = pneg %p29
      %p48 = pneg %p25
      %s49 = smul.u32 %s14, 2
      %p50 = scmp.lt.s32.totalorder %s49, 2
      %s51 = scalar_select %p50, %s49, 2
      %s52 = scalar_lea.vmem %s1, %s51
      %s53 = smul.u32 %s51, 16
      %s54 = smul.addr %s53, 16
      %s55 = scalar_lea.hbm %s3, %s54
      %s57 = sshll.u32 %s52, 4
      %s58 = int_to_ptr.vmem [resolvable:$true] %s57
      %60 = dma.vmem_to_hbm [thread:$0]  %s58, 32, %s55, [#allocation3], 16, 256, 1
      %s61 = scalar_lea.vmem %s2, %s53
      %s62 = sadd.s32 5, %s53
      %s63 = smul.addr %s62, 16
      %s64 = scalar_lea.hbm %s3, %s63
      %s65 = scalar_lea.sflag [#allocation3], 1
      %s67 = sshll.u32 %s61, 4
      %s68 = int_to_ptr.vmem [resolvable:$true] %s67
      %70 = dma.vmem_to_hbm [thread:$0]  %s68, 352, %s64, %s65, 256, 256, 11
      %v71 = vld [vmem:[%s0] sm:$0xf]
      %72 = vst [vmem:[#allocation2] sm:$0xf] %v71
      %73 = vst [vmem:[#allocation2 + $0x4] sm:$0xf] %v71
      %s74 = sadd.s32 1, %s53
      %s75 = smul.addr %s74, 16
      %s76 = scalar_lea.hbm %s3, %s75
      %s77 = scalar_lea.sflag [#allocation3], 2
      %s79 = sshll.u32 [#allocation2], 4
      %s80 = int_to_ptr.vmem [resolvable:$true] %s79
      %82 = dma.vmem_to_hbm [thread:$0]  %s80, 128, %s76, %s77, 64, 256, 4
      %s83 = smul.u32 2, 1
      %s84 = smul.u32 %s83, 1
      %s85 = sshll.u32 %s84, 4
      %86 = dma.done [#allocation3], %s85
      %s87 = smul.u32 2, 11
      %s88 = smul.u32 %s87, 1
      %s89 = sshll.u32 %s88, 4
      %90 = dma.done %s65, %s89
      %s91 = smul.u32 2, 4
      %s92 = smul.u32 %s91, 1
      %s93 = sshll.u32 %s92, 4
      %94 = dma.done %s77, %s93
    $region24: #{tpu_custom_call.1} parent=5 // pred_fallthru
      _
  $region6: #{tpu_custom_call.1} parent=0 // loop_footer
    %s13 = sadd.s32 1, %s9
  $region7: #{tpu_custom_call.1} parent=0 // loop_footer_branch
    %8 = sbr.rel target = $region3
  $region8: #{tpu_custom_call.1} parent=0 // loop_exit
    _
  %95 = vsyncmov [#allocation3]
  %s96 = vpop.sfrf %95
  %p97 = scmp.eq.s32.totalorder %s96, 0
  %p98 = pneg %p97
  %100 = shalt.err (%p98)
  %s101 = scalar_lea.sflag [#allocation3], 1
  %102 = vsyncmov %s101
  %s103 = vpop.sfrf %102
  %p104 = scmp.eq.s32.totalorder %s103, 0
  %p105 = pneg %p104
  %107 = shalt.err (%p105)
  %s108 = scalar_lea.sflag [#allocation3], 2
  %109 = vsyncmov %s108
  %s110 = vpop.sfrf %109
  %p111 = scmp.eq.s32.totalorder %s110, 0
  %p112 = pneg %p111
  %114 = shalt.err (%p112)

</llo_original>
